<compile_context>
chip_gen: v6e
topology: v6e:2x2x1
jax: 0.10.0
libtpu: 0.0.40
codegen_flags: <defaults>
</compile_context>

<pallas_src>
import jax
import jax.numpy as jnp
from jax.experimental import pallas as pl
from jax.experimental.pallas import tpu as pltpu

_LANE = 128     # lane width (last dim of a vreg)
_SUBLANE = 8    # sublane count (second-to-last dim granularity for f32)


def _round_up(x, m):
    return ((x + m - 1) // m) * m


def _autoencoder_kernel(x_ref,
                        w1_ref, b1_ref,
                        w2_ref, b2_ref,
                        w3_ref, b3_ref,
                        w4_ref, b4_ref,
                        z_ref, xhat_ref):
    """One batch tile of the fused encoder+decoder MLP."""
    cdt = w1_ref.dtype  # compute dtype for MXU operands (f32 or bf16)
    x = x_ref[...]

    # --- encoder ---
    h1 = jnp.dot(x, w1_ref[...], preferred_element_type=jnp.float32) + b1_ref[...]
    h1 = jnp.maximum(h1, 0.0)                                           # ReLU (f32)
    z = jnp.dot(h1.astype(cdt), w2_ref[...],
                preferred_element_type=jnp.float32) + b2_ref[...]
    z_ref[...] = z.astype(z_ref.dtype)                                  # lane-dense store

    # --- decoder ---
    h2 = jnp.dot(z.astype(cdt), w3_ref[...],
                 preferred_element_type=jnp.float32) + b3_ref[...]
    h2 = jnp.maximum(h2, 0.0)                                           # ReLU (f32)
    xhat = jnp.dot(h2.astype(cdt), w4_ref[...],
                   preferred_element_type=jnp.float32) + b4_ref[...]
    xhat_ref[...] = xhat.astype(xhat_ref.dtype)                         # lane-dense store


def _full_spec(arr):
    """Full-array block, pinned at block 0 (replicated across the batch grid)."""
    zeros = (0,) * arr.ndim
    return pl.BlockSpec(arr.shape, lambda i, _z=zeros: _z)


def embedding_model_forward(x, params, *, block_b=256, compute_dtype=jnp.float32):
    """x: [B, input_dim] float32.  Returns (z [B, embed_dim], x_hat [B, input_dim])."""
    w1, b1, w2, b2, w3, b3, w4, b4 = params
    B, input_dim = x.shape
    embed_dim = w2.shape[1]

    # ---- pad the narrow output feature dims up to full lane groups (32/64 -> 128) ----
    embed_pad = _round_up(embed_dim, _LANE)
    input_pad = _round_up(input_dim, _LANE)
    w2p = jnp.pad(w2, ((0, 0), (0, embed_pad - embed_dim)))
    b2p = jnp.pad(b2, ((0, 0), (0, embed_pad - embed_dim)))
    w3p = jnp.pad(w3, ((0, embed_pad - embed_dim), (0, 0)))   # zero rows: padded z cols ignored
    w4p = jnp.pad(w4, ((0, 0), (0, input_pad - input_dim)))
    b4p = jnp.pad(b4, ((0, 0), (0, input_pad - input_dim)))

    # ---- batch tiling: big tiles, >=2 grid steps when the batch allows, pad ragged B ----
    if B <= block_b:
        if B >= 2 * _SUBLANE:
            block_b = _round_up(pl.cdiv(B, 2), _SUBLANE)   # two tiles -> both v7x TCs busy
        else:
            block_b = _round_up(B, _SUBLANE)
    B_pad = _round_up(B, block_b)
    if B_pad != B:
        x = jnp.pad(x, ((0, B_pad - B), (0, 0)))

    # ---- compute dtype: bf16 on v6e/v7x doubles MXU throughput; accumulation stays f32 ----
    xc = x.astype(compute_dtype)
    w1c = w1.astype(compute_dtype)
    w2c = w2p.astype(compute_dtype)
    w3c = w3p.astype(compute_dtype)
    w4c = w4p.astype(compute_dtype)
    b1c, b2c, b3c, b4c = (b.astype(jnp.float32) for b in (b1, b2p, b3, b4p))

    grid = (B_pad // block_b,)

    in_specs = [
        pl.BlockSpec((block_b, input_dim), lambda i: (i, 0)),   # activations: batch-tiled
        _full_spec(w1c), _full_spec(b1c),
        _full_spec(w2c), _full_spec(b2c),
        _full_spec(w3c), _full_spec(b3c),
        _full_spec(w4c), _full_spec(b4c),
    ]
    out_specs = [
        pl.BlockSpec((block_b, embed_pad), lambda i: (i, 0)),   # lane-dense z
        pl.BlockSpec((block_b, input_pad), lambda i: (i, 0)),   # lane-dense x_hat
    ]
    out_shape = (
        jax.ShapeDtypeStruct((B_pad, embed_pad), jnp.float32),
        jax.ShapeDtypeStruct((B_pad, input_pad), jnp.float32),
    )

    z_full, xhat_full = pl.pallas_call(
        _autoencoder_kernel,
        out_shape=out_shape,
        grid_spec=pltpu.PrefetchScalarGridSpec(
            num_scalar_prefetch=0,
            grid=grid,
            in_specs=in_specs,
            out_specs=out_specs,
        ),
        compiler_params=pltpu.CompilerParams(
            dimension_semantics=("parallel",),   # batch tiles shard across TCs (v7x)
        ),
    )(xc, w1c, b1c, w2c, b2c, w3c, b3c, w4c, b4c)

    # strip batch + lane padding
    return z_full[:B, :embed_dim], xhat_full[:B, :input_dim]


def init_params(key, input_dim, embed_dim=32, hidden=128):
    """Deterministic synthetic parameters (PyTorch-style uniform fan-in init)."""
    def linear(key, fan_in, fan_out):
        kw, kb = jax.random.split(key)
        bound = 1.0 / jnp.sqrt(fan_in)
        w = jax.random.uniform(kw, (fan_in, fan_out), jnp.float32, -bound, bound)
        b = jax.random.uniform(kb, (1, fan_out), jnp.float32, -bound, bound)
        return w, b

    k1, k2, k3, k4 = jax.random.split(key, 4)
    w1, b1 = linear(k1, input_dim, hidden)     # encoder[0]
    w2, b2 = linear(k2, hidden, embed_dim)     # encoder[2]
    w3, b3 = linear(k3, embed_dim, hidden)     # decoder[0]
    w4, b4 = linear(k4, hidden, input_dim)     # decoder[2]
    return (w1, b1, w2, b2, w3, b3, w4, b4)


def reference_forward(x, params):
    """Pure-JAX reference for correctness checking."""
    w1, b1, w2, b2, w3, b3, w4, b4 = params
    h1 = jnp.maximum(x @ w1 + b1, 0.0)
    z = h1 @ w2 + b2
    h2 = jnp.maximum(z @ w3 + b3, 0.0)
    x_hat = h2 @ w4 + b4
    return z, x_hat


if __name__ == "__main__":
    key = jax.random.PRNGKey(0)
    k_params, k_x1, k_x2 = jax.random.split(key, 3)

    input_dim, embed_dim, hidden = 64, 32, 128
    params = init_params(k_params, input_dim, embed_dim, hidden)

    # 1) small batch, f32 compute
    B = 8
    x = jax.random.normal(k_x1, (B, input_dim), jnp.float32)
    z, x_hat = embedding_model_forward(x, params)
    jax.block_until_ready((z, x_hat))
    z_ref, x_hat_ref = reference_forward(x, params)
    assert z.shape == (B, embed_dim) and x_hat.shape == (B, input_dim)
    assert jnp.allclose(z, z_ref, atol=1e-5, rtol=1e-5)
    assert jnp.allclose(x_hat, x_hat_ref, atol=1e-5, rtol=1e-5)

    # 2) ragged batch (not a multiple of the tile) -> padded internally, multi-step grid
    B2 = 300
    x2 = jax.random.normal(k_x2, (B2, input_dim), jnp.float32)
    z2, x2_hat = embedding_model_forward(x2, params, block_b=256)
    jax.block_until_ready((z2, x2_hat))
    z2_ref, x2_hat_ref = reference_forward(x2, params)
    assert z2.shape == (B2, embed_dim) and x2_hat.shape == (B2, input_dim)
    assert jnp.allclose(z2, z2_ref, atol=1e-5, rtol=1e-5)
    assert jnp.allclose(x2_hat, x2_hat_ref, atol=1e-5, rtol=1e-5)

    # 3) bf16 compute path (v6e/v7x MXU fast path), f32 accumulation, loose tolerance
    z3, x3_hat = embedding_model_forward(x2, params, block_b=256,
                                         compute_dtype=jnp.bfloat16)
    jax.block_until_ready((z3, x3_hat))
    assert jnp.allclose(z3, z2_ref, atol=5e-2, rtol=5e-2)
    assert jnp.allclose(x3_hat, x2_hat_ref, atol=5e-2, rtol=5e-2)

    print("KERNEL_OK")
</pallas_src>

<mosaic_0001>
module attributes {stable_mosaic.version = 11 : i64} {
  func.func @_autoencoder_kernel(%arg0: i32, %arg1: memref<8x64xf32, #tpu.memory_space<vmem>>, %arg2: memref<64x128xf32, #tpu.memory_space<vmem>>, %arg3: memref<1x128xf32, #tpu.memory_space<vmem>>, %arg4: memref<128x128xf32, #tpu.memory_space<vmem>>, %arg5: memref<1x128xf32, #tpu.memory_space<vmem>>, %arg6: memref<128x128xf32, #tpu.memory_space<vmem>>, %arg7: memref<1x128xf32, #tpu.memory_space<vmem>>, %arg8: memref<128x128xf32, #tpu.memory_space<vmem>>, %arg9: memref<1x128xf32, #tpu.memory_space<vmem>>, %arg10: memref<8x128xf32, #tpu.memory_space<vmem>>, %arg11: memref<8x128xf32, #tpu.memory_space<vmem>>) attributes {dimension_semantics = [#tpu.dimension_semantics<parallel>], iteration_bounds = array<i64: 1>, scalar_prefetch = 0 : i64, scratch_operands = 0 : i64, tpu.core_type = #tpu.core_type<tc>, window_params = [{transform_indices = @transform_0, window_bounds = array<i64: 8, 64>}, {pipeline_mode = #tpu.pipeline_mode<synchronous>, transform_indices = @transform_1, window_bounds = array<i64: 64, 128>}, {pipeline_mode = #tpu.pipeline_mode<synchronous>, transform_indices = @transform_2, window_bounds = array<i64: 1, 128>}, {pipeline_mode = #tpu.pipeline_mode<synchronous>, transform_indices = @transform_3, window_bounds = array<i64: 128, 128>}, {pipeline_mode = #tpu.pipeline_mode<synchronous>, transform_indices = @transform_4, window_bounds = array<i64: 1, 128>}, {pipeline_mode = #tpu.pipeline_mode<synchronous>, transform_indices = @transform_5, window_bounds = array<i64: 128, 128>}, {pipeline_mode = #tpu.pipeline_mode<synchronous>, transform_indices = @transform_6, window_bounds = array<i64: 1, 128>}, {pipeline_mode = #tpu.pipeline_mode<synchronous>, transform_indices = @transform_7, window_bounds = array<i64: 128, 128>}, {pipeline_mode = #tpu.pipeline_mode<synchronous>, transform_indices = @transform_8, window_bounds = array<i64: 1, 128>}, {transform_indices = @transform_9, window_bounds = array<i64: 8, 128>}, {transform_indices = @transform_10, window_bounds = array<i64: 8, 128>}]} {
    %c0 = arith.constant 0 : index
    %c0_0 = arith.constant 0 : index
    %0 = vector.load %arg1[%c0, %c0_0] : memref<8x64xf32, #tpu.memory_space<vmem>>, vector<8x64xf32>
    %c0_1 = arith.constant 0 : index
    %c0_2 = arith.constant 0 : index
    %1 = vector.load %arg2[%c0_1, %c0_2] : memref<64x128xf32, #tpu.memory_space<vmem>>, vector<64x128xf32>
    %cst = arith.constant dense<0.000000e+00> : vector<8x128xf32>
    %2 = tpu.matmul %0, %1, %cst {dimension_numbers = #tpu.dot_dimension_numbers<[1], [0], [0], [1], [0, 0, 1, 1], [], []>} : vector<8x64xf32>, vector<64x128xf32>, vector<8x128xf32> -> vector<8x128xf32>
    %c0_3 = arith.constant 0 : index
    %c0_4 = arith.constant 0 : index
    %3 = vector.load %arg3[%c0_3, %c0_4] : memref<1x128xf32, #tpu.memory_space<vmem>>, vector<1x128xf32>
    %4 = vector.broadcast %3 : vector<1x128xf32> to vector<8x128xf32>
    %5 = arith.addf %2, %4 : vector<8x128xf32>
    %cst_5 = arith.constant 0.000000e+00 : f32
    %6 = vector.broadcast %cst_5 : f32 to vector<8x128xf32>
    %7 = arith.maximumf %5, %6 : vector<8x128xf32>
    %c0_6 = arith.constant 0 : index
    %c0_7 = arith.constant 0 : index
    %8 = vector.load %arg4[%c0_6, %c0_7] : memref<128x128xf32, #tpu.memory_space<vmem>>, vector<128x128xf32>
    %cst_8 = arith.constant dense<0.000000e+00> : vector<8x128xf32>
    %9 = tpu.matmul %7, %8, %cst_8 {dimension_numbers = #tpu.dot_dimension_numbers<[1], [0], [0], [1], [0, 0, 1, 1], [], []>} : vector<8x128xf32>, vector<128x128xf32>, vector<8x128xf32> -> vector<8x128xf32>
    %c0_9 = arith.constant 0 : index
    %c0_10 = arith.constant 0 : index
    %10 = vector.load %arg5[%c0_9, %c0_10] : memref<1x128xf32, #tpu.memory_space<vmem>>, vector<1x128xf32>
    %11 = vector.broadcast %10 : vector<1x128xf32> to vector<8x128xf32>
    %12 = arith.addf %9, %11 : vector<8x128xf32>
    %c0_11 = arith.constant 0 : index
    %c0_12 = arith.constant 0 : index
    %13 = vector.load %arg10[%c0_11, %c0_12] : memref<8x128xf32, #tpu.memory_space<vmem>>, vector<8x128xf32>
    tpu.vector_store %arg10[%c0_11, %c0_12], %12 {strides = array<i32>} : memref<8x128xf32, #tpu.memory_space<vmem>>, vector<8x128xf32>,
    %c0_13 = arith.constant 0 : index
    %c0_14 = arith.constant 0 : index
    %14 = vector.load %arg6[%c0_13, %c0_14] : memref<128x128xf32, #tpu.memory_space<vmem>>, vector<128x128xf32>
    %cst_15 = arith.constant dense<0.000000e+00> : vector<8x128xf32>
    %15 = tpu.matmul %12, %14, %cst_15 {dimension_numbers = #tpu.dot_dimension_numbers<[1], [0], [0], [1], [0, 0, 1, 1], [], []>} : vector<8x128xf32>, vector<128x128xf32>, vector<8x128xf32> -> vector<8x128xf32>
    %c0_16 = arith.constant 0 : index
    %c0_17 = arith.constant 0 : index
    %16 = vector.load %arg7[%c0_16, %c0_17] : memref<1x128xf32, #tpu.memory_space<vmem>>, vector<1x128xf32>
    %17 = vector.broadcast %16 : vector<1x128xf32> to vector<8x128xf32>
    %18 = arith.addf %15, %17 : vector<8x128xf32>
    %cst_18 = arith.constant 0.000000e+00 : f32
    %19 = vector.broadcast %cst_18 : f32 to vector<8x128xf32>
    %20 = arith.maximumf %18, %19 : vector<8x128xf32>
    %c0_19 = arith.constant 0 : index
    %c0_20 = arith.constant 0 : index
    %21 = vector.load %arg8[%c0_19, %c0_20] : memref<128x128xf32, #tpu.memory_space<vmem>>, vector<128x128xf32>
    %cst_21 = arith.constant dense<0.000000e+00> : vector<8x128xf32>
    %22 = tpu.matmul %20, %21, %cst_21 {dimension_numbers = #tpu.dot_dimension_numbers<[1], [0], [0], [1], [0, 0, 1, 1], [], []>} : vector<8x128xf32>, vector<128x128xf32>, vector<8x128xf32> -> vector<8x128xf32>
    %c0_22 = arith.constant 0 : index
    %c0_23 = arith.constant 0 : index
    %23 = vector.load %arg9[%c0_22, %c0_23] : memref<1x128xf32, #tpu.memory_space<vmem>>, vector<1x128xf32>
    %24 = vector.broadcast %23 : vector<1x128xf32> to vector<8x128xf32>
    %25 = arith.addf %22, %24 : vector<8x128xf32>
    %c0_24 = arith.constant 0 : index
    %c0_25 = arith.constant 0 : index
    %26 = vector.load %arg11[%c0_24, %c0_25] : memref<8x128xf32, #tpu.memory_space<vmem>>, vector<8x128xf32>
    tpu.vector_store %arg11[%c0_24, %c0_25], %25 {strides = array<i32>} : memref<8x128xf32, #tpu.memory_space<vmem>>, vector<8x128xf32>,
    return
  }
  func.func @transform_0(%arg0: i32) -> (i32, i32) {
    %c0_i32 = arith.constant 0 : i32
    %c0_i32_0 = arith.constant 0 : i32
    return %arg0, %c0_i32 : i32, i32
  }
  func.func @transform_1(%arg0: i32) -> (i32, i32) {
    %c0_i32 = arith.constant 0 : i32
    %c0_i32_0 = arith.constant 0 : i32
    %c0_i32_1 = arith.constant 0 : i32
    return %c0_i32, %c0_i32_0 : i32, i32
  }
  func.func @transform_2(%arg0: i32) -> (i32, i32) {
    %c0_i32 = arith.constant 0 : i32
    %c0_i32_0 = arith.constant 0 : i32
    %c0_i32_1 = arith.constant 0 : i32
    return %c0_i32, %c0_i32_0 : i32, i32
  }
  func.func @transform_3(%arg0: i32) -> (i32, i32) {
    %c0_i32 = arith.constant 0 : i32
    %c0_i32_0 = arith.constant 0 : i32
    %c0_i32_1 = arith.constant 0 : i32
    return %c0_i32, %c0_i32_0 : i32, i32
  }
  func.func @transform_4(%arg0: i32) -> (i32, i32) {
    %c0_i32 = arith.constant 0 : i32
    %c0_i32_0 = arith.constant 0 : i32
    %c0_i32_1 = arith.constant 0 : i32
    return %c0_i32, %c0_i32_0 : i32, i32
  }
  func.func @transform_5(%arg0: i32) -> (i32, i32) {
    %c0_i32 = arith.constant 0 : i32
    %c0_i32_0 = arith.constant 0 : i32
    %c0_i32_1 = arith.constant 0 : i32
    return %c0_i32, %c0_i32_0 : i32, i32
  }
  func.func @transform_6(%arg0: i32) -> (i32, i32) {
    %c0_i32 = arith.constant 0 : i32
    %c0_i32_0 = arith.constant 0 : i32
    %c0_i32_1 = arith.constant 0 : i32
    return %c0_i32, %c0_i32_0 : i32, i32
  }
  func.func @transform_7(%arg0: i32) -> (i32, i32) {
    %c0_i32 = arith.constant 0 : i32
    %c0_i32_0 = arith.constant 0 : i32
    %c0_i32_1 = arith.constant 0 : i32
    return %c0_i32, %c0_i32_0 : i32, i32
  }
  func.func @transform_8(%arg0: i32) -> (i32, i32) {
    %c0_i32 = arith.constant 0 : i32
    %c0_i32_0 = arith.constant 0 : i32
    %c0_i32_1 = arith.constant 0 : i32
    return %c0_i32, %c0_i32_0 : i32, i32
  }
  func.func @transform_9(%arg0: i32) -> (i32, i32) {
    %c0_i32 = arith.constant 0 : i32
    %c0_i32_0 = arith.constant 0 : i32
    return %arg0, %c0_i32 : i32, i32
  }
  func.func @transform_10(%arg0: i32) -> (i32, i32) {
    %c0_i32 = arith.constant 0 : i32
    %c0_i32_0 = arith.constant 0 : i32
    return %arg0, %c0_i32 : i32, i32
  }
}

</mosaic_0001>

<llo_original>
// kernel: tpu_custom_call.1
$region0: #{tpu_custom_call.1}
  #allocation0 [shape = 'u32[]', space=smem, size = 0x4, offset = 0x4, fixed_abs, tag = 'smem constant byte address 0x4 - core index']
  #allocation1 [shape = 'u32[144,128]{1,0:T(1,128)}', space=vmem, size = 0x12000, scoped, tag = 'internal scratch']
  %s0 = inlined_call_operand.hbm [shape: f32[8,64], index: 0, kind: input, shape index: {}]
  %s1 = inlined_call_operand.hbm [shape: f32[64,128], index: 1, kind: input, shape index: {}]
  %s2 = inlined_call_operand.vmem [shape: f32[1,128], index: 2, kind: input, shape index: {}]
  %s3 = inlined_call_operand.hbm [shape: f32[128,128], index: 3, kind: input, shape index: {}]
  %s4 = inlined_call_operand.vmem [shape: f32[1,128], index: 4, kind: input, shape index: {}]
  %s5 = inlined_call_operand.hbm [shape: f32[128,128], index: 5, kind: input, shape index: {}]
  %s6 = inlined_call_operand.vmem [shape: f32[1,128], index: 6, kind: input, shape index: {}]
  %s7 = inlined_call_operand.hbm [shape: f32[128,128], index: 7, kind: input, shape index: {}]
  %s8 = inlined_call_operand.vmem [shape: f32[1,128], index: 8, kind: input, shape index: {}]
  %s9 = inlined_call_operand.hbm [shape: f32[8,128], index: 9, kind: output, shape index: {0}]
  %s10 = inlined_call_operand.hbm [shape: f32[8,128], index: 10, kind: output, shape index: {1}]
  %11 = xla_tuple %s9, %s10
  %s12 = sld [smem:[#allocation0]]
  $region74: #{tpu_custom_call.1} parent=0
    _
  %s14 = ssub.s32 1, %s12
  %s15 = scalar_select 0, %s14, %s12
  $region1: #{tpu_custom_call.1} parent=0
    #allocation2 [shape = 'u8[4096]{0}', space=vmem, size = 0x1000, scoped, tag = 'input window, operand 0, single buffered']
    #allocation3 [shape = 's32[1]{0}', space=sflag, size = 0x4, scoped, tag = 'scoped memory for tpu_custom_call.1']
    #allocation4 [shape = 's32[1]{0}', space=sflag, size = 0x4, scoped, tag = 'scoped memory for tpu_custom_call.1']
    #allocation5 [shape = 'u8[32768]{0}', space=vmem, size = 0x8000, scoped, tag = 'input window, operand 1, single buffered']
    #allocation6 [shape = 's32[1]{0}', space=sflag, size = 0x4, scoped, tag = 'scoped memory for tpu_custom_call.1']
    #allocation7 [shape = 'u8[65536]{0}', space=vmem, size = 0x10000, scoped, tag = 'input window, operand 3, single buffered']
    #allocation8 [shape = 'u8[65536]{0}', space=vmem, size = 0x10000, scoped, tag = 'input window, operand 5, single buffered']
    #allocation9 [shape = 's32[1]{0}', space=sflag, size = 0x4, scoped, tag = 'scoped memory for tpu_custom_call.1']
    #allocation10 [shape = 'u8[65536]{0}', space=vmem, size = 0x10000, scoped, tag = 'input window, operand 7, single buffered']
    #allocation11 [shape = 'u8[4096]{0}', space=vmem, size = 0x1000, scoped, tag = 'output window, operand 0, single buffered']
    #allocation12 [shape = 'u8[4096]{0}', space=vmem, size = 0x1000, scoped, tag = 'output window, operand 1, single buffered']
    #allocation13 [shape = 's32[1]{0}', space=sflag, size = 0x4, scoped, tag = 'scoped memory for tpu_custom_call.1']
    %16 = vsyncpa [#allocation3], 0
    %17 = vsyncpa [#allocation6], 0
    %18 = vsyncpa [#allocation9], 0
    %19 = vsyncpa [#allocation4], 0
    %20 = vsyncpa [#allocation13], 0
    // Predicated region
    $region2: #{tpu_custom_call.1} parent=1 // pred_check
      _
    $region3: #{tpu_custom_call.1} parent=1 // pred_check_branch
      %22 = sbr.rel (0) target = $region5
    $region4: #{tpu_custom_call.1} parent=1 // pred_region
      %s24 = ssub.s32 128, 128
      %25 = vsyncadd [#allocation3], %s24
      %s27 = sshll.u32 [#allocation2], 4
      %s28 = int_to_ptr.vmem [resolvable:$true] %s27
      %30 = dma.hbm_to_vmem [thread:$0]  %s0, 128, %s28, [#allocation3]
    $region5: #{tpu_custom_call.1} parent=1 // pred_fallthru
      _
    // Predicated region
    $region6: #{tpu_custom_call.1} parent=1 // pred_check
      _
    $region7: #{tpu_custom_call.1} parent=1 // pred_check_branch
      %32 = sbr.rel (0) target = $region9
    $region8: #{tpu_custom_call.1} parent=1 // pred_region
      %s34 = ssub.s32 1024, 1024
      %35 = vsyncadd [#allocation6], %s34
      %s36 = sshll.u32 [#allocation5], 4
      %s37 = int_to_ptr.vmem [resolvable:$true] %s36
      %42 = dma.hbm_to_vmem [thread:$0]  %s1, 1024, %s37, [#allocation6], 128, 128, 8
    $region9: #{tpu_custom_call.1} parent=1 // pred_fallthru
      _
    // Predicated region
    $region10: #{tpu_custom_call.1} parent=1 // pred_check
      _
    $region11: #{tpu_custom_call.1} parent=1 // pred_check_branch
      %44 = sbr.rel (0) target = $region13
    $region12: #{tpu_custom_call.1} parent=1 // pred_region
      _
    $region13: #{tpu_custom_call.1} parent=1 // pred_fallthru
      _
    // Predicated region
    $region14: #{tpu_custom_call.1} parent=1 // pred_check
      _
    $region15: #{tpu_custom_call.1} parent=1 // pred_check_branch
      %46 = sbr.rel (0) target = $region17
    $region16: #{tpu_custom_call.1} parent=1 // pred_region
      %s48 = ssub.s32 2048, 2048
      %49 = vsyncadd [#allocation6], %s48
      %s50 = sshll.u32 [#allocation7], 4
      %s51 = int_to_ptr.vmem [resolvable:$true] %s50
      %56 = dma.hbm_to_vmem [thread:$0]  %s3, 2048, %s51, [#allocation6], 128, 128, 8
    $region17: #{tpu_custom_call.1} parent=1 // pred_fallthru
      _
    // Predicated region
    $region18: #{tpu_custom_call.1} parent=1 // pred_check
      _
    $region19: #{tpu_custom_call.1} parent=1 // pred_check_branch
      %58 = sbr.rel (0) target = $region21
    $region20: #{tpu_custom_call.1} parent=1 // pred_region
      _
    $region21: #{tpu_custom_call.1} parent=1 // pred_fallthru
      _
    // Predicated region
    $region22: #{tpu_custom_call.1} parent=1 // pred_check
      _
    $region23: #{tpu_custom_call.1} parent=1 // pred_check_branch
      %60 = sbr.rel (0) target = $region25
    $region24: #{tpu_custom_call.1} parent=1 // pred_region
      %s62 = ssub.s32 2048, 2048
      %63 = vsyncadd [#allocation9], %s62
      %s64 = sshll.u32 [#allocation8], 4
      %s65 = int_to_ptr.vmem [resolvable:$true] %s64
      %70 = dma.hbm_to_vmem [thread:$0]  %s5, 2048, %s65, [#allocation9], 128, 128, 8
    $region25: #{tpu_custom_call.1} parent=1 // pred_fallthru
      _
    // Predicated region
    $region26: #{tpu_custom_call.1} parent=1 // pred_check
      _
    $region27: #{tpu_custom_call.1} parent=1 // pred_check_branch
      %72 = sbr.rel (0) target = $region29
    $region28: #{tpu_custom_call.1} parent=1 // pred_region
      _
    $region29: #{tpu_custom_call.1} parent=1 // pred_fallthru
      _
    // Predicated region
    $region30: #{tpu_custom_call.1} parent=1 // pred_check
      _
    $region31: #{tpu_custom_call.1} parent=1 // pred_check_branch
      %74 = sbr.rel (0) target = $region33
    $region32: #{tpu_custom_call.1} parent=1 // pred_region
      %s76 = ssub.s32 2048, 2048
      %77 = vsyncadd [#allocation9], %s76
      %s78 = sshll.u32 [#allocation10], 4
      %s79 = int_to_ptr.vmem [resolvable:$true] %s78
      %84 = dma.hbm_to_vmem [thread:$0]  %s7, 2048, %s79, [#allocation9], 128, 128, 8
    $region33: #{tpu_custom_call.1} parent=1 // pred_fallthru
      _
    // Predicated region
    $region34: #{tpu_custom_call.1} parent=1 // pred_check
      _
    $region35: #{tpu_custom_call.1} parent=1 // pred_check_branch
      %86 = sbr.rel (0) target = $region37
    $region36: #{tpu_custom_call.1} parent=1 // pred_region
      _
    $region37: #{tpu_custom_call.1} parent=1 // pred_fallthru
      _
    // Predicated region
    $region38: #{tpu_custom_call.1} parent=1 // pred_check
      _
    $region39: #{tpu_custom_call.1} parent=1 // pred_check_branch
      %88 = sbr.rel (0) target = $region41
    $region40: #{tpu_custom_call.1} parent=1 // pred_region
      %89 = dma.done [#allocation3], 128
    $region41: #{tpu_custom_call.1} parent=1 // pred_fallthru
      _
    // Predicated region
    $region42: #{tpu_custom_call.1} parent=1 // pred_check
      _
    $region43: #{tpu_custom_call.1} parent=1 // pred_check_branch
      %91 = sbr.rel (0) target = $region45
    $region44: #{tpu_custom_call.1} parent=1 // pred_region
      %92 = dma.done [#allocation6], 1024
    $region45: #{tpu_custom_call.1} parent=1 // pred_fallthru
      _
    // Predicated region
    $region46: #{tpu_custom_call.1} parent=1 // pred_check
      _
    $region47: #{tpu_custom_call.1} parent=1 // pred_check_branch
      %94 = sbr.rel (0) target = $region49
    $region48: #{tpu_custom_call.1} parent=1 // pred_region
      %95 = dma.done [#allocation6], 2048
    $region49: #{tpu_custom_call.1} parent=1 // pred_fallthru
      _
    // Predicated region
    $region50: #{tpu_custom_call.1} parent=1 // pred_check
      _
    $region51: #{tpu_custom_call.1} parent=1 // pred_check_branch
      %97 = sbr.rel (0) target = $region53
    $region52: #{tpu_custom_call.1} parent=1 // pred_region
      %98 = dma.done [#allocation9], 2048
    $region53: #{tpu_custom_call.1} parent=1 // pred_fallthru
      _
    // Predicated region
    $region54: #{tpu_custom_call.1} parent=1 // pred_check
      _
    $region55: #{tpu_custom_call.1} parent=1 // pred_check_branch
      %100 = sbr.rel (0) target = $region57
    $region56: #{tpu_custom_call.1} parent=1 // pred_region
      %101 = dma.done [#allocation9], 2048
    $region57: #{tpu_custom_call.1} parent=1 // pred_fallthru
      _
    %v102 = vld [vmem:[#allocation2] sm:$0xff]
    %v103 = vld [vmem:[#allocation5] sm:$0xff]
    %v104 = vld [vmem:[#allocation5 + $0x8] sm:$0xff]
    %v105 = vld [vmem:[#allocation5 + $0x10] sm:$0xff]
    %v106 = vld [vmem:[#allocation5 + $0x18] sm:$0xff]
    %v107 = vld [vmem:[#allocation5 + $0x20] sm:$0xff]
    %v108 = vld [vmem:[#allocation5 + $0x28] sm:$0xff]
    %v109 = vld [vmem:[#allocation5 + $0x30] sm:$0xff]
    %v110 = vld [vmem:[#allocation5 + $0x38] sm:$0xff]
    %v111 = vld [vmem:[%s2] sm:$0x1]
    %v113 = vlaneseq
    %v114 = vshrl.u32 %v113, 7
    %v115 = vsub.s32 0, %v114
    %v116 = vrot.slane %v111, %v115
    %vm118 = vcmask 523264
    %v120 = vsel %vm118, %v102, 0
    %122 = vmatprep.subr.mxu0 0.0
    %123 = vmatpush1.msra.mxu0 0.0
    %124 = vmatprep.subr.mxu0 0.0
    %125 = vmatpush1.msra.mxu0 0.0
    %126 = vmatprep.subr.mxu0 0.0
    %127 = vmatpush1.msra.mxu0 0.0
    %128 = vmatprep.subr.mxu0 0.0
    %129 = vmatpush1.msra.mxu0 0.0
    %130 = vmatprep.subr.mxu0 0.0
    %131 = vmatpush1.msra.mxu0 0.0
    %132 = vmatprep.subr.mxu0 0.0
    %133 = vmatpush1.msra.mxu0 0.0
    %134 = vmatprep.subr.mxu0 0.0
    %135 = vmatpush1.msra.mxu0 0.0
    %136 = vmatprep.subr.mxu0 0.0
    %137 = vmatpush1.msra.mxu0 0.0
    %138 = vmatprep.subr.mxu0 0.0
    %139 = vmatpush1.msra.mxu0 %v110
    %140 = vmatprep.subr.mxu0 0.0
    %141 = vmatpush1.msra.mxu0 %v109
    %142 = vmatprep.subr.mxu0 0.0
    %143 = vmatpush1.msra.mxu0 %v108
    %144 = vmatprep.subr.mxu0 0.0
    %145 = vmatpush1.msra.mxu0 %v107
    %146 = vmatprep.subr.mxu0 0.0
    %147 = vmatpush1.msra.mxu0 %v106
    %148 = vmatprep.subr.mxu0 0.0
    %149 = vmatpush1.msra.mxu0 %v105
    %150 = vmatprep.subr.mxu0 0.0
    %151 = vmatpush1.msra.mxu0 %v104
    %152 = vmatprep.subr.mxu0 0.0
    %153 = vmatpush1.msra.mxu0 %v103
    %154 = vmatprep.subr.mxu0 0.0
    %155 = vmatpush2.msra.mxu0 0.0
    %156 = vmatprep.subr.mxu0 0.0
    %157 = vmatpush2.msra.mxu0 0.0
    %158 = vmatprep.subr.mxu0 0.0
    %159 = vmatpush2.msra.mxu0 0.0
    %160 = vmatprep.subr.mxu0 0.0
    %161 = vmatpush2.msra.mxu0 0.0
    %162 = vmatprep.subr.mxu0 0.0
    %163 = vmatpush2.msra.mxu0 0.0
    %164 = vmatprep.subr.mxu0 0.0
    %165 = vmatpush2.msra.mxu0 0.0
    %166 = vmatprep.subr.mxu0 0.0
    %167 = vmatpush2.msra.mxu0 0.0
    %168 = vmatprep.subr.mxu0 0.0
    %169 = vmatpush2.msra.mxu0 0.0
    %170 = vmatprep.subr.mxu0 0.0
    %171 = vmatpush2.msra.mxu0 0.0
    %172 = vmatprep.subr.mxu0 0.0
    %173 = vmatpush2.msra.mxu0 0.0
    %174 = vmatprep.subr.mxu0 0.0
    %175 = vmatpush2.msra.mxu0 0.0
    %176 = vmatprep.subr.mxu0 0.0
    %177 = vmatpush2.msra.mxu0 0.0
    %178 = vmatprep.subr.mxu0 0.0
    %179 = vmatpush2.msra.mxu0 0.0
    %180 = vmatprep.subr.mxu0 0.0
    %181 = vmatpush2.msra.mxu0 0.0
    %182 = vmatprep.subr.mxu0 0.0
    %183 = vmatpush2.msra.mxu0 0.0
    %184 = vmatprep.subr.mxu0 0.0
    %185 = vmatpush2.msra.mxu0 0.0
    %186 = vmatprep.mubr.f32.mxu0 0.0
    %187 = vmatmul.mubr.f32.gmra.mxu0 %v120
    %v188 = vpop.f32.mrf.mxu0
    %v189 = vadd.f32 %v116, %v188
    %v190 = vpop.f32.mrf.mxu0
    %191 = vdwg.mxu0
    %v192 = vmax.f32 %v189, 0.0
    %v193 = vld [vmem:[#allocation7] sm:$0xff]
    %v194 = vld [vmem:[#allocation7 + $0x8] sm:$0xff]
    %v195 = vld [vmem:[#allocation7 + $0x10] sm:$0xff]
    %v196 = vld [vmem:[#allocation7 + $0x18] sm:$0xff]
    %v197 = vld [vmem:[#allocation7 + $0x20] sm:$0xff]
    %v198 = vld [vmem:[#allocation7 + $0x28] sm:$0xff]
    %v199 = vld [vmem:[#allocation7 + $0x30] sm:$0xff]
    %v200 = vld [vmem:[#allocation7 + $0x38] sm:$0xff]
    %v201 = vld [vmem:[#allocation7 + $0x40] sm:$0xff]
    %v202 = vld [vmem:[#allocation7 + $0x48] sm:$0xff]
    %v203 = vld [vmem:[#allocation7 + $0x50] sm:$0xff]
    %v204 = vld [vmem:[#allocation7 + $0x58] sm:$0xff]
    %v205 = vld [vmem:[#allocation7 + $0x60] sm:$0xff]
    %v206 = vld [vmem:[#allocation7 + $0x68] sm:$0xff]
    %v207 = vld [vmem:[#allocation7 + $0x70] sm:$0xff]
    %v208 = vld [vmem:[#allocation7 + $0x78] sm:$0xff]
    %v209 = vld [vmem:[%s4] sm:$0x1]
    %v211 = vlaneseq
    %v212 = vshrl.u32 %v211, 7
    %v213 = vsub.s32 0, %v212
    %v214 = vrot.slane %v209, %v213
    %216 = vmatprep.subr.mxu0 0.0
    %217 = vmatpush1.msra.mxu0 %v208
    %218 = vmatprep.subr.mxu0 0.0
    %219 = vmatpush1.msra.mxu0 %v207
    %220 = vmatprep.subr.mxu0 0.0
    %221 = vmatpush1.msra.mxu0 %v206
    %222 = vmatprep.subr.mxu0 0.0
    %223 = vmatpush1.msra.mxu0 %v205
    %224 = vmatprep.subr.mxu0 0.0
    %225 = vmatpush1.msra.mxu0 %v204
    %226 = vmatprep.subr.mxu0 0.0
    %227 = vmatpush1.msra.mxu0 %v203
    %228 = vmatprep.subr.mxu0 0.0
    %229 = vmatpush1.msra.mxu0 %v202
    %230 = vmatprep.subr.mxu0 0.0
    %231 = vmatpush1.msra.mxu0 %v201
    %232 = vmatprep.subr.mxu0 0.0
    %233 = vmatpush1.msra.mxu0 %v200
    %234 = vmatprep.subr.mxu0 0.0
    %235 = vmatpush1.msra.mxu0 %v199
    %236 = vmatprep.subr.mxu0 0.0
    %237 = vmatpush1.msra.mxu0 %v198
    %238 = vmatprep.subr.mxu0 0.0
    %239 = vmatpush1.msra.mxu0 %v197
    %240 = vmatprep.subr.mxu0 0.0
    %241 = vmatpush1.msra.mxu0 %v196
    %242 = vmatprep.subr.mxu0 0.0
    %243 = vmatpush1.msra.mxu0 %v195
    %244 = vmatprep.subr.mxu0 0.0
    %245 = vmatpush1.msra.mxu0 %v194
    %246 = vmatprep.subr.mxu0 0.0
    %247 = vmatpush1.msra.mxu0 %v193
    %248 = vmatprep.subr.mxu0 0.0
    %249 = vmatpush2.msra.mxu0 0.0
    %250 = vmatprep.subr.mxu0 0.0
    %251 = vmatpush2.msra.mxu0 0.0
    %252 = vmatprep.subr.mxu0 0.0
    %253 = vmatpush2.msra.mxu0 0.0
    %254 = vmatprep.subr.mxu0 0.0
    %255 = vmatpush2.msra.mxu0 0.0
    %256 = vmatprep.subr.mxu0 0.0
    %257 = vmatpush2.msra.mxu0 0.0
    %258 = vmatprep.subr.mxu0 0.0
    %259 = vmatpush2.msra.mxu0 0.0
    %260 = vmatprep.subr.mxu0 0.0
    %261 = vmatpush2.msra.mxu0 0.0
    %262 = vmatprep.subr.mxu0 0.0
    %263 = vmatpush2.msra.mxu0 0.0
    %264 = vmatprep.subr.mxu0 0.0
    %265 = vmatpush2.msra.mxu0 0.0
    %266 = vmatprep.subr.mxu0 0.0
    %267 = vmatpush2.msra.mxu0 0.0
    %268 = vmatprep.subr.mxu0 0.0
    %269 = vmatpush2.msra.mxu0 0.0
    %270 = vmatprep.subr.mxu0 0.0
    %271 = vmatpush2.msra.mxu0 0.0
    %272 = vmatprep.subr.mxu0 0.0
    %273 = vmatpush2.msra.mxu0 0.0
    %274 = vmatprep.subr.mxu0 0.0
    %275 = vmatpush2.msra.mxu0 0.0
    %276 = vmatprep.subr.mxu0 0.0
    %277 = vmatpush2.msra.mxu0 0.0
    %278 = vmatprep.subr.mxu0 0.0
    %279 = vmatpush2.msra.mxu0 0.0
    %280 = vmatprep.mubr.f32.mxu0 0.0
    %281 = vmatmul.mubr.f32.gmra.mxu0 %v192
    %v282 = vpop.f32.mrf.mxu0
    %v283 = vadd.f32 %v214, %v282
    %v284 = vpop.f32.mrf.mxu0
    %285 = vdwg.mxu0
    %286 = vst [vmem:[#allocation11] sm:$0xff] %v283
    %v287 = vld [vmem:[#allocation8] sm:$0xff]
    %v288 = vld [vmem:[#allocation8 + $0x8] sm:$0xff]
    %v289 = vld [vmem:[#allocation8 + $0x10] sm:$0xff]
    %v290 = vld [vmem:[#allocation8 + $0x18] sm:$0xff]
    %v291 = vld [vmem:[#allocation8 + $0x20] sm:$0xff]
    %v292 = vld [vmem:[#allocation8 + $0x28] sm:$0xff]
    %v293 = vld [vmem:[#allocation8 + $0x30] sm:$0xff]
    %v294 = vld [vmem:[#allocation8 + $0x38] sm:$0xff]
    %v295 = vld [vmem:[#allocation8 + $0x40] sm:$0xff]
    %v296 = vld [vmem:[#allocation8 + $0x48] sm:$0xff]
    %v297 = vld [vmem:[#allocation8 + $0x50] sm:$0xff]
    %v298 = vld [vmem:[#allocation8 + $0x58] sm:$0xff]
    %v299 = vld [vmem:[#allocation8 + $0x60] sm:$0xff]
    %v300 = vld [vmem:[#allocation8 + $0x68] sm:$0xff]
    %v301 = vld [vmem:[#allocation8 + $0x70] sm:$0xff]
    %v302 = vld [vmem:[#allocation8 + $0x78] sm:$0xff]
    %v303 = vld [vmem:[%s6] sm:$0x1]
    %v305 = vlaneseq
    %v306 = vshrl.u32 %v305, 7
    %v307 = vsub.s32 0, %v306
    %v308 = vrot.slane %v303, %v307
    %310 = vmatprep.subr.mxu0 0.0
    %311 = vmatpush1.msra.mxu0 %v302
    %312 = vmatprep.subr.mxu0 0.0
    %313 = vmatpush1.msra.mxu0 %v301
    %314 = vmatprep.subr.mxu0 0.0
    %315 = vmatpush1.msra.mxu0 %v300
    %316 = vmatprep.subr.mxu0 0.0
    %317 = vmatpush1.msra.mxu0 %v299
    %318 = vmatprep.subr.mxu0 0.0
    %319 = vmatpush1.msra.mxu0 %v298
    %320 = vmatprep.subr.mxu0 0.0
    %321 = vmatpush1.msra.mxu0 %v297
    %322 = vmatprep.subr.mxu0 0.0
    %323 = vmatpush1.msra.mxu0 %v296
    %324 = vmatprep.subr.mxu0 0.0
    %325 = vmatpush1.msra.mxu0 %v295
    %326 = vmatprep.subr.mxu0 0.0
    %327 = vmatpush1.msra.mxu0 %v294
    %328 = vmatprep.subr.mxu0 0.0
    %329 = vmatpush1.msra.mxu0 %v293
    %330 = vmatprep.subr.mxu0 0.0
    %331 = vmatpush1.msra.mxu0 %v292
    %332 = vmatprep.subr.mxu0 0.0
    %333 = vmatpush1.msra.mxu0 %v291
    %334 = vmatprep.subr.mxu0 0.0
    %335 = vmatpush1.msra.mxu0 %v290
    %336 = vmatprep.subr.mxu0 0.0
    %337 = vmatpush1.msra.mxu0 %v289
    %338 = vmatprep.subr.mxu0 0.0
    %339 = vmatpush1.msra.mxu0 %v288
    %340 = vmatprep.subr.mxu0 0.0
    %341 = vmatpush1.msra.mxu0 %v287
    %342 = vmatprep.subr.mxu0 0.0
    %343 = vmatpush2.msra.mxu0 0.0
    %344 = vmatprep.subr.mxu0 0.0
    %345 = vmatpush2.msra.mxu0 0.0
    %346 = vmatprep.subr.mxu0 0.0
    %347 = vmatpush2.msra.mxu0 0.0
    %348 = vmatprep.subr.mxu0 0.0
    %349 = vmatpush2.msra.mxu0 0.0
    %350 = vmatprep.subr.mxu0 0.0
    %351 = vmatpush2.msra.mxu0 0.0
    %352 = vmatprep.subr.mxu0 0.0
    %353 = vmatpush2.msra.mxu0 0.0
    %354 = vmatprep.subr.mxu0 0.0
    %355 = vmatpush2.msra.mxu0 0.0
    %356 = vmatprep.subr.mxu0 0.0
    %357 = vmatpush2.msra.mxu0 0.0
    %358 = vmatprep.subr.mxu0 0.0
    %359 = vmatpush2.msra.mxu0 0.0
    %360 = vmatprep.subr.mxu0 0.0
    %361 = vmatpush2.msra.mxu0 0.0
    %362 = vmatprep.subr.mxu0 0.0
    %363 = vmatpush2.msra.mxu0 0.0
    %364 = vmatprep.subr.mxu0 0.0
    %365 = vmatpush2.msra.mxu0 0.0
    %366 = vmatprep.subr.mxu0 0.0
    %367 = vmatpush2.msra.mxu0 0.0
    %368 = vmatprep.subr.mxu0 0.0
    %369 = vmatpush2.msra.mxu0 0.0
    %370 = vmatprep.subr.mxu0 0.0
    %371 = vmatpush2.msra.mxu0 0.0
    %372 = vmatprep.subr.mxu0 0.0
    %373 = vmatpush2.msra.mxu0 0.0
    %374 = vmatprep.mubr.f32.mxu0 0.0
    %375 = vmatmul.mubr.f32.gmra.mxu0 %v283
    %v376 = vpop.f32.mrf.mxu0
    %v377 = vadd.f32 %v308, %v376
    %v378 = vpop.f32.mrf.mxu0
    %379 = vdwg.mxu0
    %v380 = vmax.f32 %v377, 0.0
    %v381 = vld [vmem:[#allocation10] sm:$0xff]
    %v382 = vld [vmem:[#allocation10 + $0x8] sm:$0xff]
    %v383 = vld [vmem:[#allocation10 + $0x10] sm:$0xff]
    %v384 = vld [vmem:[#allocation10 + $0x18] sm:$0xff]
    %v385 = vld [vmem:[#allocation10 + $0x20] sm:$0xff]
    %v386 = vld [vmem:[#allocation10 + $0x28] sm:$0xff]
    %v387 = vld [vmem:[#allocation10 + $0x30] sm:$0xff]
    %v388 = vld [vmem:[#allocation10 + $0x38] sm:$0xff]
    %v389 = vld [vmem:[#allocation10 + $0x40] sm:$0xff]
    %v390 = vld [vmem:[#allocation10 + $0x48] sm:$0xff]
    %v391 = vld [vmem:[#allocation10 + $0x50] sm:$0xff]
    %v392 = vld [vmem:[#allocation10 + $0x58] sm:$0xff]
    %v393 = vld [vmem:[#allocation10 + $0x60] sm:$0xff]
    %v394 = vld [vmem:[#allocation10 + $0x68] sm:$0xff]
    %v395 = vld [vmem:[#allocation10 + $0x70] sm:$0xff]
    %v396 = vld [vmem:[#allocation10 + $0x78] sm:$0xff]
    %v397 = vld [vmem:[%s8] sm:$0x1]
    %v399 = vlaneseq
    %v400 = vshrl.u32 %v399, 7
    %v401 = vsub.s32 0, %v400
    %v402 = vrot.slane %v397, %v401
    %404 = vmatprep.subr.mxu0 0.0
    %405 = vmatpush1.msra.mxu0 %v396
    %406 = vmatprep.subr.mxu0 0.0
    %407 = vmatpush1.msra.mxu0 %v395
    %408 = vmatprep.subr.mxu0 0.0
    %409 = vmatpush1.msra.mxu0 %v394
    %410 = vmatprep.subr.mxu0 0.0
    %411 = vmatpush1.msra.mxu0 %v393
    %412 = vmatprep.subr.mxu0 0.0
    %413 = vmatpush1.msra.mxu0 %v392
    %414 = vmatprep.subr.mxu0 0.0
    %415 = vmatpush1.msra.mxu0 %v391
    %416 = vmatprep.subr.mxu0 0.0
    %417 = vmatpush1.msra.mxu0 %v390
    %418 = vmatprep.subr.mxu0 0.0
    %419 = vmatpush1.msra.mxu0 %v389
    %420 = vmatprep.subr.mxu0 0.0
    %421 = vmatpush1.msra.mxu0 %v388
    %422 = vmatprep.subr.mxu0 0.0
    %423 = vmatpush1.msra.mxu0 %v387
    %424 = vmatprep.subr.mxu0 0.0
    %425 = vmatpush1.msra.mxu0 %v386
    %426 = vmatprep.subr.mxu0 0.0
    %427 = vmatpush1.msra.mxu0 %v385
    %428 = vmatprep.subr.mxu0 0.0
    %429 = vmatpush1.msra.mxu0 %v384
    %430 = vmatprep.subr.mxu0 0.0
    %431 = vmatpush1.msra.mxu0 %v383
    %432 = vmatprep.subr.mxu0 0.0
    %433 = vmatpush1.msra.mxu0 %v382
    %434 = vmatprep.subr.mxu0 0.0
    %435 = vmatpush1.msra.mxu0 %v381
    %436 = vmatprep.subr.mxu0 0.0
    %437 = vmatpush2.msra.mxu0 0.0
    %438 = vmatprep.subr.mxu0 0.0
    %439 = vmatpush2.msra.mxu0 0.0
    %440 = vmatprep.subr.mxu0 0.0
    %441 = vmatpush2.msra.mxu0 0.0
    %442 = vmatprep.subr.mxu0 0.0
    %443 = vmatpush2.msra.mxu0 0.0
    %444 = vmatprep.subr.mxu0 0.0
    %445 = vmatpush2.msra.mxu0 0.0
    %446 = vmatprep.subr.mxu0 0.0
    %447 = vmatpush2.msra.mxu0 0.0
    %448 = vmatprep.subr.mxu0 0.0
    %449 = vmatpush2.msra.mxu0 0.0
    %450 = vmatprep.subr.mxu0 0.0
    %451 = vmatpush2.msra.mxu0 0.0
    %452 = vmatprep.subr.mxu0 0.0
    %453 = vmatpush2.msra.mxu0 0.0
    %454 = vmatprep.subr.mxu0 0.0
    %455 = vmatpush2.msra.mxu0 0.0
    %456 = vmatprep.subr.mxu0 0.0
    %457 = vmatpush2.msra.mxu0 0.0
    %458 = vmatprep.subr.mxu0 0.0
    %459 = vmatpush2.msra.mxu0 0.0
    %460 = vmatprep.subr.mxu0 0.0
    %461 = vmatpush2.msra.mxu0 0.0
    %462 = vmatprep.subr.mxu0 0.0
    %463 = vmatpush2.msra.mxu0 0.0
    %464 = vmatprep.subr.mxu0 0.0
    %465 = vmatpush2.msra.mxu0 0.0
    %466 = vmatprep.subr.mxu0 0.0
    %467 = vmatpush2.msra.mxu0 0.0
    %468 = vmatprep.mubr.f32.mxu0 0.0
    %469 = vmatmul.mubr.f32.gmra.mxu0 %v380
    %v470 = vpop.f32.mrf.mxu0
    %v471 = vadd.f32 %v402, %v470
    %v472 = vpop.f32.mrf.mxu0
    %473 = vdwg.mxu0
    %474 = vst [vmem:[#allocation12] sm:$0xff] %v471
    // Predicated region
    $region58: #{tpu_custom_call.1} parent=1 // pred_check
      _
    $region59: #{tpu_custom_call.1} parent=1 // pred_check_branch
      %476 = sbr.rel (0) target = $region61
    $region60: #{tpu_custom_call.1} parent=1 // pred_region
      %s478 = ssub.s32 128, 128
      %479 = vsyncadd [#allocation4], %s478
      %s481 = sshll.u32 [#allocation11], 4
      %s482 = int_to_ptr.vmem [resolvable:$true] %s481
      %484 = dma.vmem_to_hbm [thread:$0]  %s482, 128, %s9, [#allocation4]
    $region61: #{tpu_custom_call.1} parent=1 // pred_fallthru
      _
    // Predicated region
    $region62: #{tpu_custom_call.1} parent=1 // pred_check
      _
    $region63: #{tpu_custom_call.1} parent=1 // pred_check_branch
      %486 = sbr.rel (0) target = $region65
    $region64: #{tpu_custom_call.1} parent=1 // pred_region
      %s488 = ssub.s32 128, 128
      %489 = vsyncadd [#allocation13], %s488
      %s491 = sshll.u32 [#allocation12], 4
      %s492 = int_to_ptr.vmem [resolvable:$true] %s491
      %494 = dma.vmem_to_hbm [thread:$0]  %s492, 128, %s10, [#allocation13]
    $region65: #{tpu_custom_call.1} parent=1 // pred_fallthru
      _
    // Predicated region
    $region66: #{tpu_custom_call.1} parent=1 // pred_check
      _
    $region67: #{tpu_custom_call.1} parent=1 // pred_check_branch
      %496 = sbr.rel (0) target = $region69
    $region68: #{tpu_custom_call.1} parent=1 // pred_region
      %497 = dma.done [#allocation4], 128
    $region69: #{tpu_custom_call.1} parent=1 // pred_fallthru
      _
    // Predicated region
    $region70: #{tpu_custom_call.1} parent=1 // pred_check
      _
    $region71: #{tpu_custom_call.1} parent=1 // pred_check_branch
      %499 = sbr.rel (0) target = $region73
    $region72: #{tpu_custom_call.1} parent=1 // pred_region
      %500 = dma.done [#allocation13], 128
    $region73: #{tpu_custom_call.1} parent=1 // pred_fallthru
      _
    %501 = vsyncpa [#allocation3], 1
    %502 = vsyncpa [#allocation6], 1
    %503 = vsyncpa [#allocation9], 1
    %504 = vsyncpa [#allocation4], 1
    %505 = vsyncpa [#allocation13], 1

</llo_original>
